<compile_context>
chip_gen: v5e
topology: v5e:2x2
jax: 0.10.0
libtpu: 0.0.40
codegen_flags: <defaults>
</compile_context>

<pallas_src>
import functools

import jax
import jax.numpy as jnp
from jax.experimental import pallas as pl
from jax.experimental.pallas import tpu as pltpu


def _movielens_kernel(u_ref, m_ref, o_ref, *, lo, hi):
    """u_ref/m_ref: (Ep, SB, 128) fused rows (batch on lanes); o_ref: (SB, 128)."""
    u = u_ref[...].astype(jnp.float32)
    m = m_ref[...].astype(jnp.float32)
    # Row-wise dot of fused rows = u_emb.m_emb + u_bias + m_bias, reduced over
    # the leading (non-tiled) Ep axis -> pure VALU adds, no cross-lane work.
    logit = jnp.sum(u * m, axis=0)                        # (SB, 128)
    o_ref[...] = jax.nn.sigmoid(logit) * (hi - lo) + lo   # lane+sublane dense store


def build_fused_tables(user_emb, user_bias, movie_emb, movie_bias,
                       dtype=jnp.float32):
    """Fold biases into the embedding rows and store Ep-major (transposed).

    user rows  = [u_emb, u_bias, 1]  -> returned as (E+2, nusers)
    movie rows = [m_emb, 1, m_bias]  -> returned as (E+2, nmovies)

    Build these ONCE outside the per-step path; rebuilding per call would
    rewrite the full tables to HBM on every forward.  dtype=jnp.bfloat16
    halves table + activation HBM traffic (kernel upcasts to f32).
    """
    nusers = user_emb.shape[0]
    nmovies = movie_emb.shape[0]
    ones_u = jnp.ones((nusers, 1), user_emb.dtype)
    ones_m = jnp.ones((nmovies, 1), movie_emb.dtype)
    user_fused_t = jnp.concatenate([user_emb, user_bias, ones_u], axis=1).T
    movie_fused_t = jnp.concatenate([movie_emb, ones_m, movie_bias], axis=1).T
    return user_fused_t.astype(dtype), movie_fused_t.astype(dtype)


def movielens_forward_fused(inp, user_fused_t, movie_fused_t, ratings_range,
                            *, tb=1024):
    """Pallas forward pass on pre-built fused, Ep-major tables.

    inp:            [B, 2] int   (user id, movie id)
    user_fused_t:   [E+2, nusers]
    movie_fused_t:  [E+2, nmovies]
    returns:        [B] float32
    """
    assert tb % 1024 == 0, "tb must be a multiple of 1024 (whole (8,128) vregs)"
    B = inp.shape[0]
    Ep = user_fused_t.shape[0]
    lo, hi = float(ratings_range[0]), float(ratings_range[1])

    # Batch tiling: lane-dense 128-wide output rows, tb rows per grid step.
    B128 = pl.cdiv(B, 128) * 128
    if B128 <= tb:
        tb = B128                         # single tile; block = full extent
    n_tiles = pl.cdiv(B, tb)
    B_pad = n_tiles * tb
    sb = tb // 128                        # output sublane rows per grid step

    u_ids = inp[:, 0].astype(jnp.int32)
    m_ids = inp[:, 1].astype(jnp.int32)
    pad = B_pad - B
    if pad:
        zeros = jnp.zeros((pad,), jnp.int32)
        u_ids = jnp.concatenate([u_ids, zeros])
        m_ids = jnp.concatenate([m_ids, zeros])

    # Dense gather against the Ep-major tables -> transposed (Ep, B_pad) slabs,
    # reshaped (layout-free) to (Ep, B_pad//128, 128) so the kernel sees whole
    # (8,128) vreg tiles with the batch on the lane axis.
    u_slab = jnp.take(user_fused_t, u_ids, axis=1).reshape(Ep, B_pad // 128, 128)
    m_slab = jnp.take(movie_fused_t, m_ids, axis=1).reshape(Ep, B_pad // 128, 128)

    kernel = functools.partial(_movielens_kernel, lo=lo, hi=hi)
    out = pl.pallas_call(
        kernel,
        out_shape=jax.ShapeDtypeStruct((B_pad // 128, 128), jnp.float32),
        grid=(n_tiles,),
        in_specs=[
            pl.BlockSpec((Ep, sb, 128), lambda i: (0, i, 0)),
            pl.BlockSpec((Ep, sb, 128), lambda i: (0, i, 0)),
        ],
        out_specs=pl.BlockSpec((sb, 128), lambda i: (i, 0)),
        compiler_params=pltpu.CompilerParams(
            dimension_semantics=("parallel",)),
    )(u_slab, m_slab)

    return out.reshape(B_pad)[:B]


def movielens_forward(inp, user_emb, user_bias, movie_emb, movie_bias,
                      ratings_range, *, tb=1024, table_dtype=jnp.float32):
    """Convenience wrapper.  For best performance build the fused tables once
    with build_fused_tables() and call movielens_forward_fused directly."""
    uf, mf = build_fused_tables(user_emb, user_bias, movie_emb, movie_bias,
                                dtype=table_dtype)
    return movielens_forward_fused(inp, uf, mf, ratings_range, tb=tb)


def movielens_reference(inp, user_emb, user_bias, movie_emb, movie_bias,
                        ratings_range):
    """Pure-JAX reference mirroring the PyTorch forward()."""
    lo, hi = float(ratings_range[0]), float(ratings_range[1])
    u = inp[:, 0]
    m = inp[:, 1]
    u_emb = user_emb[u]           # [B, E]
    m_emb = movie_emb[m]          # [B, E]
    u_b = user_bias[u, 0]         # [B]
    m_b = movie_bias[m, 0]        # [B]
    y = jnp.sum(u_emb * m_emb, axis=1) + u_b + m_b
    return jax.nn.sigmoid(y) * (hi - lo) + lo


if __name__ == "__main__":
    # Small, deterministic setup consistent with Model.__init__.
    nusers = 64
    nmovies = 48
    embed_size = 32
    ratings_range = (0.5, 5.0)

    key = jax.random.PRNGKey(0)
    k_ue, k_ub, k_me, k_mb, _, _ = jax.random.split(key, 6)

    # embed_*.weight.data.normal_(0, 0.01); bias embeddings keep default N(0,1).
    user_emb = 0.01 * jax.random.normal(k_ue, (nusers, embed_size), jnp.float32)
    user_bias = jax.random.normal(k_ub, (nusers, 1), jnp.float32)
    movie_emb = 0.01 * jax.random.normal(k_me, (nmovies, embed_size), jnp.float32)
    movie_bias = jax.random.normal(k_mb, (nmovies, 1), jnp.float32)

    # Fused tables built once, outside the per-call path.
    user_fused_t, movie_fused_t = build_fused_tables(
        user_emb, user_bias, movie_emb, movie_bias)

    # B=8: single 128-wide tile.  B=2500: multi-tile grid + padding path.
    for B in (8, 2500):
        kb = jax.random.fold_in(key, B)
        k_u, k_m = jax.random.split(kb)
        u_ids = jax.random.randint(k_u, (B,), 0, nusers, jnp.int32)
        m_ids = jax.random.randint(k_m, (B,), 0, nmovies, jnp.int32)
        inp = jnp.stack([u_ids, m_ids], axis=1)   # [B, 2] int32

        out = movielens_forward_fused(inp, user_fused_t, movie_fused_t,
                                      ratings_range)
        out = jax.block_until_ready(out)

        ref = movielens_reference(inp, user_emb, user_bias, movie_emb,
                                  movie_bias, ratings_range)
        assert out.shape == (B,)
        assert jnp.allclose(out, ref, atol=1e-5, rtol=1e-5), (B, out, ref)

    print("KERNEL_OK")
</pallas_src>

<mosaic_0001>
module attributes {stable_mosaic.version = 11 : i64} {
  func.func @_movielens_kernel(%arg0: i32, %arg1: memref<34x1x128xf32, #tpu.memory_space<vmem>>, %arg2: memref<34x1x128xf32, #tpu.memory_space<vmem>>, %arg3: memref<1x128xf32, #tpu.memory_space<vmem>>) attributes {dimension_semantics = [#tpu.dimension_semantics<parallel>], iteration_bounds = array<i64: 1>, scalar_prefetch = 0 : i64, scratch_operands = 0 : i64, tpu.core_type = #tpu.core_type<tc>, window_params = [{transform_indices = @transform_0, window_bounds = array<i64: 34, 1, 128>}, {transform_indices = @transform_1, window_bounds = array<i64: 34, 1, 128>}, {transform_indices = @transform_2, window_bounds = array<i64: 1, 128>}]} {
    %c0 = arith.constant 0 : index
    %c0_0 = arith.constant 0 : index
    %c0_1 = arith.constant 0 : index
    %0 = vector.load %arg1[%c0, %c0_0, %c0_1] : memref<34x1x128xf32, #tpu.memory_space<vmem>>, vector<34x1x128xf32>
    %c0_2 = arith.constant 0 : index
    %c0_3 = arith.constant 0 : index
    %c0_4 = arith.constant 0 : index
    %1 = vector.load %arg2[%c0_2, %c0_3, %c0_4] : memref<34x1x128xf32, #tpu.memory_space<vmem>>, vector<34x1x128xf32>
    %2 = arith.mulf %0, %1 : vector<34x1x128xf32>
    %cst = arith.constant dense<0.000000e+00> : vector<1x128xf32>
    %3 = vector.multi_reduction <add>, %2, %cst [0] : vector<34x1x128xf32> to vector<1x128xf32>
    %4 = arith.negf %3 : vector<1x128xf32>
    %5 = math.exp %4 : vector<1x128xf32>
    %cst_5 = arith.constant 1.000000e+00 : f32
    %6 = vector.broadcast %cst_5 : f32 to vector<1x128xf32>
    %7 = arith.addf %6, %5 : vector<1x128xf32>
    %8 = arith.divf %6, %7 : vector<1x128xf32>
    %cst_6 = arith.constant 4.500000e+00 : f32
    %9 = vector.broadcast %cst_6 : f32 to vector<1x128xf32>
    %10 = arith.mulf %8, %9 : vector<1x128xf32>
    %cst_7 = arith.constant 5.000000e-01 : f32
    %11 = vector.broadcast %cst_7 : f32 to vector<1x128xf32>
    %12 = arith.addf %10, %11 : vector<1x128xf32>
    %c0_8 = arith.constant 0 : index
    %c0_9 = arith.constant 0 : index
    %13 = vector.load %arg3[%c0_8, %c0_9] : memref<1x128xf32, #tpu.memory_space<vmem>>, vector<1x128xf32>
    tpu.vector_store %arg3[%c0_8, %c0_9], %12 {strides = array<i32>} : memref<1x128xf32, #tpu.memory_space<vmem>>, vector<1x128xf32>,
    return
  }
  func.func @transform_0(%arg0: i32) -> (i32, i32, i32) {
    %c0_i32 = arith.constant 0 : i32
    %c0_i32_0 = arith.constant 0 : i32
    %c0_i32_1 = arith.constant 0 : i32
    return %c0_i32, %arg0, %c0_i32_0 : i32, i32, i32
  }
  func.func @transform_1(%arg0: i32) -> (i32, i32, i32) {
    %c0_i32 = arith.constant 0 : i32
    %c0_i32_0 = arith.constant 0 : i32
    %c0_i32_1 = arith.constant 0 : i32
    return %c0_i32, %arg0, %c0_i32_0 : i32, i32, i32
  }
  func.func @transform_2(%arg0: i32) -> (i32, i32) {
    %c0_i32 = arith.constant 0 : i32
    %c0_i32_0 = arith.constant 0 : i32
    return %arg0, %c0_i32 : i32, i32
  }
}

</mosaic_0001>

<llo_original>
// kernel: tpu_custom_call.1
$region0: #{tpu_custom_call.1}
  #allocation0 [shape = 'u32[]', space=smem, size = 0x4, offset = 0x4, fixed_abs, tag = 'smem constant byte address 0x4 - core index']
  #allocation1 [shape = 'u32[72,128]{1,0:T(1,128)}', space=vmem, size = 0x9000, scoped, tag = 'internal scratch']
  %s0 = inlined_call_operand.hbm [shape: f32[34,1,128], index: 0, kind: input, shape index: {}]
  %s1 = inlined_call_operand.hbm [shape: f32[34,1,128], index: 1, kind: input, shape index: {}]
  %s2 = inlined_call_operand.hbm [shape: f32[1,128], index: 2, kind: output, shape index: {}]
  %s3 = sld [smem:[#allocation0]]
  $region26: #{tpu_custom_call.1} parent=0
    _
  %s5 = ssub.s32 1, %s3
  %s6 = scalar_select 0, %s5, %s3
  $region1: #{tpu_custom_call.1} parent=0
    #allocation2 [shape = 'u8[17408]{0}', space=vmem, size = 0x4400, scoped, tag = 'input window, operand 0, single buffered']
    #allocation3 [shape = 's32[1]{0}', space=sflag, size = 0x4, scoped, tag = 'scoped memory for tpu_custom_call.1']
    #allocation4 [shape = 's32[1]{0}', space=sflag, size = 0x4, scoped, tag = 'scoped memory for tpu_custom_call.1']
    #allocation5 [shape = 'u8[17408]{0}', space=vmem, size = 0x4400, scoped, tag = 'input window, operand 1, single buffered']
    #allocation6 [shape = 's32[1]{0}', space=sflag, size = 0x4, scoped, tag = 'scoped memory for tpu_custom_call.1']
    #allocation7 [shape = 'u8[512]{0}', space=vmem, size = 0x400, scoped, tag = 'output window, operand 0, single buffered']
    %7 = vsyncpa [#allocation3], 0
    %8 = vsyncpa [#allocation6], 0
    %9 = vsyncpa [#allocation4], 0
    // Predicated region
    $region2: #{tpu_custom_call.1} parent=1 // pred_check
      _
    $region3: #{tpu_custom_call.1} parent=1 // pred_check_branch
      %11 = sbr.rel (0) target = $region5
    $region4: #{tpu_custom_call.1} parent=1 // pred_region
      %13 = vsyncadd [#allocation3], 0
      %s14 = sshll.u32 %s0, 4
      %s15 = int_to_ptr.hbm [resolvable:$true] %s14
      %s16 = sshll.u32 [#allocation2], 4
      %s17 = int_to_ptr.vmem [resolvable:$true] %s16
      %22 = dma.hbm_to_vmem [thread:$0]  %s15, 544, %s17, [#allocation3], 16, 16, 1
    $region5: #{tpu_custom_call.1} parent=1 // pred_fallthru
      _
    // Predicated region
    $region6: #{tpu_custom_call.1} parent=1 // pred_check
      _
    $region7: #{tpu_custom_call.1} parent=1 // pred_check_branch
      %24 = sbr.rel (0) target = $region9
    $region8: #{tpu_custom_call.1} parent=1 // pred_region
      %26 = vsyncadd [#allocation6], 0
      %s27 = sshll.u32 %s1, 4
      %s28 = int_to_ptr.hbm [resolvable:$true] %s27
      %s29 = sshll.u32 [#allocation5], 4
      %s30 = int_to_ptr.vmem [resolvable:$true] %s29
      %35 = dma.hbm_to_vmem [thread:$0]  %s28, 544, %s30, [#allocation6], 16, 16, 1
    $region9: #{tpu_custom_call.1} parent=1 // pred_fallthru
      _
    // Predicated region
    $region10: #{tpu_custom_call.1} parent=1 // pred_check
      _
    $region11: #{tpu_custom_call.1} parent=1 // pred_check_branch
      %37 = sbr.rel (0) target = $region13
    $region12: #{tpu_custom_call.1} parent=1 // pred_region
      %39 = dma.done [#allocation3], 544
    $region13: #{tpu_custom_call.1} parent=1 // pred_fallthru
      _
    // Predicated region
    $region14: #{tpu_custom_call.1} parent=1 // pred_check
      _
    $region15: #{tpu_custom_call.1} parent=1 // pred_check_branch
      %41 = sbr.rel (0) target = $region17
    $region16: #{tpu_custom_call.1} parent=1 // pred_region
      %43 = dma.done [#allocation6], 544
    $region17: #{tpu_custom_call.1} parent=1 // pred_fallthru
      _
    %v44 = vld [vmem:[#allocation2] sm:$0x1]
    %v45 = vld [vmem:[#allocation2 + $0x1] sm:$0x1]
    %v46 = vld [vmem:[#allocation2 + $0x2] sm:$0x1]
    %v47 = vld [vmem:[#allocation2 + $0x3] sm:$0x1]
    %v48 = vld [vmem:[#allocation2 + $0x4] sm:$0x1]
    %v49 = vld [vmem:[#allocation2 + $0x5] sm:$0x1]
    %v50 = vld [vmem:[#allocation2 + $0x6] sm:$0x1]
    %v51 = vld [vmem:[#allocation2 + $0x7] sm:$0x1]
    %v52 = vld [vmem:[#allocation2 + $0x8] sm:$0x1]
    %v53 = vld [vmem:[#allocation2 + $0x9] sm:$0x1]
    %v54 = vld [vmem:[#allocation2 + $0xa] sm:$0x1]
    %v55 = vld [vmem:[#allocation2 + $0xb] sm:$0x1]
    %v56 = vld [vmem:[#allocation2 + $0xc] sm:$0x1]
    %v57 = vld [vmem:[#allocation2 + $0xd] sm:$0x1]
    %v58 = vld [vmem:[#allocation2 + $0xe] sm:$0x1]
    %v59 = vld [vmem:[#allocation2 + $0xf] sm:$0x1]
    %v60 = vld [vmem:[#allocation2 + $0x10] sm:$0x1]
    %v61 = vld [vmem:[#allocation2 + $0x11] sm:$0x1]
    %v62 = vld [vmem:[#allocation2 + $0x12] sm:$0x1]
    %v63 = vld [vmem:[#allocation2 + $0x13] sm:$0x1]
    %v64 = vld [vmem:[#allocation2 + $0x14] sm:$0x1]
    %v65 = vld [vmem:[#allocation2 + $0x15] sm:$0x1]
    %v66 = vld [vmem:[#allocation2 + $0x16] sm:$0x1]
    %v67 = vld [vmem:[#allocation2 + $0x17] sm:$0x1]
    %v68 = vld [vmem:[#allocation2 + $0x18] sm:$0x1]
    %v69 = vld [vmem:[#allocation2 + $0x19] sm:$0x1]
    %v70 = vld [vmem:[#allocation2 + $0x1a] sm:$0x1]
    %v71 = vld [vmem:[#allocation2 + $0x1b] sm:$0x1]
    %v72 = vld [vmem:[#allocation2 + $0x1c] sm:$0x1]
    %v73 = vld [vmem:[#allocation2 + $0x1d] sm:$0x1]
    %v74 = vld [vmem:[#allocation2 + $0x1e] sm:$0x1]
    %v75 = vld [vmem:[#allocation2 + $0x1f] sm:$0x1]
    %v76 = vld [vmem:[#allocation2 + $0x20] sm:$0x1]
    %v77 = vld [vmem:[#allocation2 + $0x21] sm:$0x1]
    %v78 = vld [vmem:[#allocation5] sm:$0x1]
    %v79 = vld [vmem:[#allocation5 + $0x1] sm:$0x1]
    %v80 = vld [vmem:[#allocation5 + $0x2] sm:$0x1]
    %v81 = vld [vmem:[#allocation5 + $0x3] sm:$0x1]
    %v82 = vld [vmem:[#allocation5 + $0x4] sm:$0x1]
    %v83 = vld [vmem:[#allocation5 + $0x5] sm:$0x1]
    %v84 = vld [vmem:[#allocation5 + $0x6] sm:$0x1]
    %v85 = vld [vmem:[#allocation5 + $0x7] sm:$0x1]
    %v86 = vld [vmem:[#allocation5 + $0x8] sm:$0x1]
    %v87 = vld [vmem:[#allocation5 + $0x9] sm:$0x1]
    %v88 = vld [vmem:[#allocation5 + $0xa] sm:$0x1]
    %v89 = vld [vmem:[#allocation5 + $0xb] sm:$0x1]
    %v90 = vld [vmem:[#allocation5 + $0xc] sm:$0x1]
    %v91 = vld [vmem:[#allocation5 + $0xd] sm:$0x1]
    %v92 = vld [vmem:[#allocation5 + $0xe] sm:$0x1]
    %v93 = vld [vmem:[#allocation5 + $0xf] sm:$0x1]
    %v94 = vld [vmem:[#allocation5 + $0x10] sm:$0x1]
    %v95 = vld [vmem:[#allocation5 + $0x11] sm:$0x1]
    %v96 = vld [vmem:[#allocation5 + $0x12] sm:$0x1]
    %v97 = vld [vmem:[#allocation5 + $0x13] sm:$0x1]
    %v98 = vld [vmem:[#allocation5 + $0x14] sm:$0x1]
    %v99 = vld [vmem:[#allocation5 + $0x15] sm:$0x1]
    %v100 = vld [vmem:[#allocation5 + $0x16] sm:$0x1]
    %v101 = vld [vmem:[#allocation5 + $0x17] sm:$0x1]
    %v102 = vld [vmem:[#allocation5 + $0x18] sm:$0x1]
    %v103 = vld [vmem:[#allocation5 + $0x19] sm:$0x1]
    %v104 = vld [vmem:[#allocation5 + $0x1a] sm:$0x1]
    %v105 = vld [vmem:[#allocation5 + $0x1b] sm:$0x1]
    %v106 = vld [vmem:[#allocation5 + $0x1c] sm:$0x1]
    %v107 = vld [vmem:[#allocation5 + $0x1d] sm:$0x1]
    %v108 = vld [vmem:[#allocation5 + $0x1e] sm:$0x1]
    %v109 = vld [vmem:[#allocation5 + $0x1f] sm:$0x1]
    %v110 = vld [vmem:[#allocation5 + $0x20] sm:$0x1]
    %v111 = vld [vmem:[#allocation5 + $0x21] sm:$0x1]
    %v112 = vmul.f32 %v44, %v78
    %v113 = vmul.f32 %v45, %v79
    %v114 = vmul.f32 %v46, %v80
    %v115 = vmul.f32 %v47, %v81
    %v116 = vmul.f32 %v48, %v82
    %v117 = vmul.f32 %v49, %v83
    %v118 = vmul.f32 %v50, %v84
    %v119 = vmul.f32 %v51, %v85
    %v120 = vmul.f32 %v52, %v86
    %v121 = vmul.f32 %v53, %v87
    %v122 = vmul.f32 %v54, %v88
    %v123 = vmul.f32 %v55, %v89
    %v124 = vmul.f32 %v56, %v90
    %v125 = vmul.f32 %v57, %v91
    %v126 = vmul.f32 %v58, %v92
    %v127 = vmul.f32 %v59, %v93
    %v128 = vmul.f32 %v60, %v94
    %v129 = vmul.f32 %v61, %v95
    %v130 = vmul.f32 %v62, %v96
    %v131 = vmul.f32 %v63, %v97
    %v132 = vmul.f32 %v64, %v98
    %v133 = vmul.f32 %v65, %v99
    %v134 = vmul.f32 %v66, %v100
    %v135 = vmul.f32 %v67, %v101
    %v136 = vmul.f32 %v68, %v102
    %v137 = vmul.f32 %v69, %v103
    %v138 = vmul.f32 %v70, %v104
    %v139 = vmul.f32 %v71, %v105
    %v140 = vmul.f32 %v72, %v106
    %v141 = vmul.f32 %v73, %v107
    %v142 = vmul.f32 %v74, %v108
    %v143 = vmul.f32 %v75, %v109
    %v144 = vmul.f32 %v76, %v110
    %v145 = vmul.f32 %v77, %v111
    %vm146 = vcmask 1040384
    %v147 = vsel %vm146, %v112, 0.0
    %v148 = vsel %vm146, %v113, 0.0
    %v149 = vadd.f32 %v147, %v148
    %v150 = vsel %vm146, %v114, 0.0
    %v151 = vadd.f32 %v149, %v150
    %v152 = vsel %vm146, %v115, 0.0
    %v153 = vadd.f32 %v151, %v152
    %v154 = vsel %vm146, %v116, 0.0
    %v155 = vadd.f32 %v153, %v154
    %v156 = vsel %vm146, %v117, 0.0
    %v157 = vadd.f32 %v155, %v156
    %v158 = vsel %vm146, %v118, 0.0
    %v159 = vadd.f32 %v157, %v158
    %v160 = vsel %vm146, %v119, 0.0
    %v161 = vadd.f32 %v159, %v160
    %v162 = vsel %vm146, %v120, 0.0
    %v163 = vadd.f32 %v161, %v162
    %v164 = vsel %vm146, %v121, 0.0
    %v165 = vadd.f32 %v163, %v164
    %v166 = vsel %vm146, %v122, 0.0
    %v167 = vadd.f32 %v165, %v166
    %v168 = vsel %vm146, %v123, 0.0
    %v169 = vadd.f32 %v167, %v168
    %v170 = vsel %vm146, %v124, 0.0
    %v171 = vadd.f32 %v169, %v170
    %v172 = vsel %vm146, %v125, 0.0
    %v173 = vadd.f32 %v171, %v172
    %v174 = vsel %vm146, %v126, 0.0
    %v175 = vadd.f32 %v173, %v174
    %v176 = vsel %vm146, %v127, 0.0
    %v177 = vadd.f32 %v175, %v176
    %v178 = vsel %vm146, %v128, 0.0
    %v179 = vadd.f32 %v177, %v178
    %v180 = vsel %vm146, %v129, 0.0
    %v181 = vadd.f32 %v179, %v180
    %v182 = vsel %vm146, %v130, 0.0
    %v183 = vadd.f32 %v181, %v182
    %v184 = vsel %vm146, %v131, 0.0
    %v185 = vadd.f32 %v183, %v184
    %v186 = vsel %vm146, %v132, 0.0
    %v187 = vadd.f32 %v185, %v186
    %v188 = vsel %vm146, %v133, 0.0
    %v189 = vadd.f32 %v187, %v188
    %v190 = vsel %vm146, %v134, 0.0
    %v191 = vadd.f32 %v189, %v190
    %v192 = vsel %vm146, %v135, 0.0
    %v193 = vadd.f32 %v191, %v192
    %v194 = vsel %vm146, %v136, 0.0
    %v195 = vadd.f32 %v193, %v194
    %v196 = vsel %vm146, %v137, 0.0
    %v197 = vadd.f32 %v195, %v196
    %v198 = vsel %vm146, %v138, 0.0
    %v199 = vadd.f32 %v197, %v198
    %v200 = vsel %vm146, %v139, 0.0
    %v201 = vadd.f32 %v199, %v200
    %v202 = vsel %vm146, %v140, 0.0
    %v203 = vadd.f32 %v201, %v202
    %v204 = vsel %vm146, %v141, 0.0
    %v205 = vadd.f32 %v203, %v204
    %v206 = vsel %vm146, %v142, 0.0
    %v207 = vadd.f32 %v205, %v206
    %v208 = vsel %vm146, %v143, 0.0
    %v209 = vadd.f32 %v207, %v208
    %v210 = vsel %vm146, %v144, 0.0
    %v211 = vadd.f32 %v209, %v210
    %v212 = vsel %vm146, %v145, 0.0
    %v213 = vadd.f32 %v211, %v212
    %v214 = vxor.u32 %v213, 2147483648
    %v215 = vmul.f32 %v214, 1.442695
    %v216 = vpow.pop %v215
    %v217 = vadd.f32 %v216, 1.0
    %v218 = vrcp.pop %v217
    %v219 = vmul.f32 %v217, %v218
    %v220 = vsub.f32 1.0, %v219
    %v221 = vmul.f32 %v218, %v220
    %v222 = vadd.f32 %v218, %v221
    %vm223 = vweird.f32 %v217
    %vm224 = vweird.f32 %v218
    %vm225 = vmor %vm223, %vm224
    %v226 = vsel %vm225, %v218, %v222
    %v227 = vand.u32 2147483647, %v217
    %vm228 = vcmp.eq.f32.partialorder %v227, 8.507059e+37
    %v229 = vand.u32 %v217, 2147483648
    %v230 = vor.u32 1.1754944e-38, %v229
    %v231 = vsel %vm228, %v230, %v226
    %v232 = vmul.f32 1.0, %v231
    %v233 = vmul.f32 %v232, 4.5
    %v234 = vadd.f32 %v233, 0.5
    %235 = vst [vmem:[#allocation7] sm:$0x1] %v234
    // Predicated region
    $region18: #{tpu_custom_call.1} parent=1 // pred_check
      _
    $region19: #{tpu_custom_call.1} parent=1 // pred_check_branch
      %237 = sbr.rel (0) target = $region21
    $region20: #{tpu_custom_call.1} parent=1 // pred_region
      %239 = vsyncadd [#allocation4], 0
      %s241 = sshll.u32 [#allocation7], 4
      %s242 = int_to_ptr.vmem [resolvable:$true] %s241
      %s243 = sshll.u32 %s2, 4
      %s244 = int_to_ptr.hbm [resolvable:$true] %s243
      %246 = dma.vmem_to_hbm [thread:$0]  %s242, 16, %s244, [#allocation4]
    $region21: #{tpu_custom_call.1} parent=1 // pred_fallthru
      _
    // Predicated region
    $region22: #{tpu_custom_call.1} parent=1 // pred_check
      _
    $region23: #{tpu_custom_call.1} parent=1 // pred_check_branch
      %248 = sbr.rel (0) target = $region25
    $region24: #{tpu_custom_call.1} parent=1 // pred_region
      %250 = dma.done [#allocation4], 16
    $region25: #{tpu_custom_call.1} parent=1 // pred_fallthru
      _
    %251 = vsyncpa [#allocation3], 1
    %252 = vsyncpa [#allocation6], 1
    %253 = vsyncpa [#allocation4], 1

</llo_original>
